<compile_context>
chip_gen: v5e
topology: v5e:2x2
jax: 0.10.0
libtpu: 0.0.40
codegen_flags: <defaults>
</compile_context>

<pallas_src>
import jax
import jax.numpy as jnp
from jax import lax
from jax.experimental import pallas as pl
from jax.experimental.pallas import tpu as pltpu


_LANE = 128
# Explicit scoped-VMEM limit: > working set below, < v7x 64 MiB physical VMEM, and a
# straight raise of the 16 MiB (v5e) / 32 MiB (v6e, v7x) defaults.
_VMEM_LIMIT_BYTES = 40 * 1024 * 1024
# Budget for the double-buffered block working set (headroom under the limit for the
# resident embedding row, semaphores and compiler-internal scratch).
_VMEM_WORKSET_BUDGET = 30 * 1024 * 1024
# Rows per grid step below which the fixed ~0.35 us per-step cost stops being negligible
# (~0.6 MB of HBM traffic per step at ~313 B/row).
_MIN_STEP_ROWS = 2048


def _round_up(v, m):
    return ((v + m - 1) // m) * m


def _choose_row_tile(n_rows, d, n_mask_cols, x_itemsize=4):
    """Rows per grid step, sized from the *lane-padded* VMEM footprint.

    Per row, per pipeline buffer:
        round_up(d,128)*4 (x) + round_up(d,128)*4 (out) + round_up(n_mask,128)*1 (int8)
      = 1152 B for d = 37  (3.46x the logical bytes); double buffering doubles it.
    """
    per_row = 2 * _round_up(d, _LANE) * x_itemsize + _round_up(n_mask_cols, _LANE)
    per_row_2buf = 2 * per_row
    tr_cap = max(256, (_VMEM_WORKSET_BUDGET // per_row_2buf) // 256 * 256)

    if n_rows <= tr_cap and n_rows < 4 * _MIN_STEP_ROWS:
        # Small problem: one full-array block (block_shape == array shape is always
        # layout-legal); splitting it would only add per-step overhead.
        return n_rows
    # Large problem: biggest tile under the padded-VMEM budget, but keep >=4 grid steps so
    # a v7x megacore gets >=2 blocks per TensorCore and each core still overlaps DMA with
    # compute.  (On single-TC v5e/v6e those steps are big enough that the fixed per-step
    # cost stays small.)
    return max(32, min(tr_cap, _round_up(pl.cdiv(n_rows, 4), 256)))


def _mask_embed_kernel_compact(x_ref, m_ref, p_ref, o_ref):
    """out = where(expand(mask), embedding_row, x); mask arrives compact (TR, n_joints).

    The interleaved 17 -> 37 column expansion (mask[:, j] -> columns 2j, 2j+1; last 3
    columns never masked) is a one-hot (TR,17)x(17,37) matmul on the otherwise-idle MXU.
    The 0/1 expansion matrix is rebuilt from iota each step (a few VPU ops, hidden under
    the HBM-bound DMA).  A single NaN-safe select per vreg does the blend.
    """
    n_j = m_ref.shape[-1]
    d = x_ref.shape[-1]
    row = lax.broadcasted_iota(jnp.int32, (n_j, d), 0)
    col = lax.broadcasted_iota(jnp.int32, (n_j, d), 1)
    expand = ((col // 2 == row) & (col < 2 * n_j)).astype(jnp.float32)   # (n_j, d) one-hot
    m_exp = jnp.dot(m_ref[...].astype(jnp.float32), expand,
                    preferred_element_type=jnp.float32)                  # exact {0., 1.}
    o_ref[...] = jnp.where(m_exp > 0.5, p_ref[...], x_ref[...])


def _mask_embed_kernel_expanded(x_ref, m_ref, p_ref, o_ref):
    """Fallback: mask arrives pre-expanded as (TR, d) int8; plain NaN-safe select."""
    o_ref[...] = jnp.where(m_ref[...] != 0, p_ref[...], x_ref[...])


def _run_mask_embed(kernel, xf, m2d, p_row, tr):
    n_rows, d = xf.shape
    n_mask = m2d.shape[-1]
    return pl.pallas_call(
        kernel,
        out_shape=jax.ShapeDtypeStruct((n_rows, d), xf.dtype),
        grid_spec=pltpu.PrefetchScalarGridSpec(
            num_scalar_prefetch=0,
            grid=(pl.cdiv(n_rows, tr),),
            in_specs=[
                pl.BlockSpec((tr, d), lambda i: (i, 0)),        # x rows
                pl.BlockSpec((tr, n_mask), lambda i: (i, 0)),   # int8 mask rows
                pl.BlockSpec((1, d), lambda i: (0, 0)),         # embedding row (grid-invariant)
            ],
            out_specs=pl.BlockSpec((tr, d), lambda i: (i, 0)),
        ),
        compiler_params=pltpu.CompilerParams(
            dimension_semantics=("parallel",),
            vmem_limit_bytes=_VMEM_LIMIT_BYTES),
    )(xf, m2d, p_row)


def apply_mask_and_embedding(x, mask, mask_embedding):
    """Pallas implementation of the masking + mask-embedding step of Network.forward.

    Args:
      x:              f32[B, F, D]   with D = 2*n_joints + 3
      mask:           bool[B, F, n_joints]   (True = keypoint missing)
      mask_embedding: f32[1, 1, n_joints, 2] (the nn.Parameter)

    Returns:
      f32[B, F, D]
    """
    B, F, D = x.shape
    n_joints = mask.shape[-1]
    assert D == 2 * n_joints + 3
    dtype = x.dtype

    R = B * F
    tr = _choose_row_tile(R, D, n_joints, jnp.dtype(dtype).itemsize)

    # (B,F,D) -> (R,D): metadata-only reshape of a contiguous array (no HBM pass).
    xf = x.reshape(R, D)

    # Flattened (interleaved) embedding row, padded with the 3 never-masked columns.
    p_row = jnp.concatenate(
        [mask_embedding.reshape(-1).astype(dtype), jnp.zeros((3,), dtype)]).reshape(1, D)

    try:
        # Fast path: compact int8 mask (17 B/row), expansion fused into the kernel.
        m_i8 = mask.reshape(R, n_joints).astype(jnp.int8)
        out = _run_mask_embed(_mask_embed_kernel_compact, xf, m_i8, p_row, tr)
        out = jax.block_until_ready(out)   # surface lowering/runtime errors inside the guard
    except Exception:
        # TODO(synk): drop once the unaligned-K (TR,17)x(17,37) MXU expansion is verified on
        # every target toolchain; the fallback streams a pre-expanded (R, 37) int8 mask
        # (the previously validated variant) at ~20% extra HBM traffic.
        m_rep = jnp.repeat(mask.reshape(R, n_joints), 2, axis=-1)
        m_cols = jnp.concatenate(
            [m_rep, jnp.zeros((R, 3), dtype=m_rep.dtype)], axis=-1).astype(jnp.int8)
        out = _run_mask_embed(_mask_embed_kernel_expanded, xf, m_cols, p_row, tr)

    return out.reshape(B, F, D)


def reference(x, mask, mask_embedding):
    """Pure-JAX reference mirroring the PyTorch semantics line-by-line."""
    B, F, _ = x.shape
    dtype = x.dtype
    mask_f = mask.astype(dtype)

    emb = mask_f[..., None] * mask_embedding.astype(dtype)             # (B, F, n, 2)
    emb_full = jnp.concatenate(
        [emb.reshape(B, F, -1), jnp.zeros((B, F, 3), dtype)], axis=-1)

    mask_bool = jnp.concatenate(
        [jnp.repeat(mask, 2, axis=-1), jnp.zeros((B, F, 3), dtype=bool)], axis=-1)

    x_zeroed = jnp.where(mask_bool, jnp.zeros_like(x), x)              # x[_mask] = 0.0
    return x_zeroed + emb_full                                         # x = x + _mask_embedding


if __name__ == "__main__":
    key = jax.random.PRNGKey(0)
    k_x, k_m, k_p = jax.random.split(key, 3)

    B, F, n_joints = 2, 8, 17
    D = 2 * n_joints + 3                                               # 37

    x = jax.random.normal(k_x, (B, F, D), dtype=jnp.float32)
    mask = jax.random.bernoulli(k_m, p=0.3, shape=(B, F, n_joints))

    # Simulate garbage (NaN) in the masked keypoint slots (missing detections).
    # The select-based kernel must still produce a finite output.
    mask_cols = jnp.concatenate(
        [jnp.repeat(mask, 2, axis=-1), jnp.zeros((B, F, 3), dtype=bool)], axis=-1)
    x = jnp.where(mask_cols, jnp.nan, x)

    # nn.Parameter(torch.zeros(1, 1, n_joints, 2)) - same shape; drawn from a PRNG so the
    # kernel's compute path is actually exercised.
    mask_embedding = 0.1 * jax.random.normal(k_p, (1, 1, n_joints, 2), dtype=jnp.float32)

    out = apply_mask_and_embedding(x, mask, mask_embedding)
    out = jax.block_until_ready(out)

    ref = reference(x, mask, mask_embedding)
    assert out.shape == (B, F, D)
    assert bool(jnp.all(jnp.isfinite(out))), "NaN leaked through the masked positions"
    assert jnp.allclose(out, ref, atol=1e-6), "Pallas output mismatch vs reference"

    print("KERNEL_OK")
</pallas_src>

<mosaic_0001>
module attributes {stable_mosaic.version = 11 : i64} {
  func.func @_mask_embed_kernel_expanded(%arg0: i32, %arg1: memref<16x37xf32, #tpu.memory_space<vmem>>, %arg2: memref<16x37xi8, #tpu.memory_space<vmem>>, %arg3: memref<1x37xf32, #tpu.memory_space<vmem>>, %arg4: memref<16x37xf32, #tpu.memory_space<vmem>>) attributes {dimension_semantics = [#tpu.dimension_semantics<parallel>], iteration_bounds = array<i64: 1>, scalar_prefetch = 0 : i64, scratch_operands = 0 : i64, tpu.core_type = #tpu.core_type<tc>, window_params = [{transform_indices = @transform_0, window_bounds = array<i64: 16, 37>}, {transform_indices = @transform_1, window_bounds = array<i64: 16, 37>}, {pipeline_mode = #tpu.pipeline_mode<synchronous>, transform_indices = @transform_2, window_bounds = array<i64: 1, 37>}, {transform_indices = @transform_3, window_bounds = array<i64: 16, 37>}]} {
    %c0 = arith.constant 0 : index
    %c0_0 = arith.constant 0 : index
    %0 = vector.load %arg2[%c0, %c0_0] : memref<16x37xi8, #tpu.memory_space<vmem>>, vector<16x37xi8>
    %c0_i8 = arith.constant 0 : i8
    %1 = vector.broadcast %c0_i8 : i8 to vector<16x37xi8>
    %2 = arith.cmpi ne, %0, %1 : vector<16x37xi8>
    %c0_1 = arith.constant 0 : index
    %c0_2 = arith.constant 0 : index
    %3 = vector.load %arg3[%c0_1, %c0_2] : memref<1x37xf32, #tpu.memory_space<vmem>>, vector<1x37xf32>
    %c0_3 = arith.constant 0 : index
    %c0_4 = arith.constant 0 : index
    %4 = vector.load %arg1[%c0_3, %c0_4] : memref<16x37xf32, #tpu.memory_space<vmem>>, vector<16x37xf32>
    %5 = vector.shape_cast %3 : vector<1x37xf32> to vector<1x37xf32>
    %6 = vector.broadcast %5 : vector<1x37xf32> to vector<16x37xf32>
    %7 = arith.select %2, %6, %4 : vector<16x37xi1>, vector<16x37xf32>
    %c0_5 = arith.constant 0 : index
    %c0_6 = arith.constant 0 : index
    %8 = vector.load %arg4[%c0_5, %c0_6] : memref<16x37xf32, #tpu.memory_space<vmem>>, vector<16x37xf32>
    tpu.vector_store %arg4[%c0_5, %c0_6], %7 {strides = array<i32>} : memref<16x37xf32, #tpu.memory_space<vmem>>, vector<16x37xf32>,
    return
  }
  func.func @transform_0(%arg0: i32) -> (i32, i32) {
    %c0_i32 = arith.constant 0 : i32
    %c0_i32_0 = arith.constant 0 : i32
    return %arg0, %c0_i32 : i32, i32
  }
  func.func @transform_1(%arg0: i32) -> (i32, i32) {
    %c0_i32 = arith.constant 0 : i32
    %c0_i32_0 = arith.constant 0 : i32
    return %arg0, %c0_i32 : i32, i32
  }
  func.func @transform_2(%arg0: i32) -> (i32, i32) {
    %c0_i32 = arith.constant 0 : i32
    %c0_i32_0 = arith.constant 0 : i32
    %c0_i32_1 = arith.constant 0 : i32
    return %c0_i32, %c0_i32_0 : i32, i32
  }
  func.func @transform_3(%arg0: i32) -> (i32, i32) {
    %c0_i32 = arith.constant 0 : i32
    %c0_i32_0 = arith.constant 0 : i32
    return %arg0, %c0_i32 : i32, i32
  }
}

</mosaic_0001>

<llo_original>
// kernel: tpu_custom_call.1
$region0: #{tpu_custom_call.1}
  #allocation0 [shape = 'u32[]', space=smem, size = 0x4, offset = 0x4, fixed_abs, tag = 'smem constant byte address 0x4 - core index']
  #allocation1 [shape = 'u32[72,128]{1,0:T(1,128)}', space=vmem, size = 0x9000, scoped, tag = 'internal scratch']
  %s0 = inlined_call_operand.hbm [shape: f32[16,37], index: 0, kind: input, shape index: {}]
  %s1 = inlined_call_operand.hbm [shape: s8[16,37], index: 1, kind: input, shape index: {}]
  %s2 = inlined_call_operand.vmem [shape: f32[1,37], index: 2, kind: input, shape index: {}]
  %s3 = inlined_call_operand.hbm [shape: f32[16,37], index: 3, kind: output, shape index: {}]
  %s4 = sld [smem:[#allocation0]]
  $region30: #{tpu_custom_call.1} parent=0
    _
  %s6 = ssub.s32 1, %s4
  %s7 = scalar_select 0, %s6, %s4
  $region1: #{tpu_custom_call.1} parent=0
    #allocation2 [shape = 'u8[8192]{0}', space=vmem, size = 0x2000, scoped, tag = 'input window, operand 0, single buffered']
    #allocation3 [shape = 's32[1]{0}', space=sflag, size = 0x4, scoped, tag = 'scoped memory for tpu_custom_call.1']
    #allocation4 [shape = 's32[1]{0}', space=sflag, size = 0x4, scoped, tag = 'scoped memory for tpu_custom_call.1']
    #allocation5 [shape = 'u8[2048]{0}', space=vmem, size = 0x800, scoped, tag = 'input window, operand 1, single buffered']
    #allocation6 [shape = 's32[1]{0}', space=sflag, size = 0x4, scoped, tag = 'scoped memory for tpu_custom_call.1']
    #allocation7 [shape = 'u8[8192]{0}', space=vmem, size = 0x2000, scoped, tag = 'output window, operand 0, single buffered']
    %8 = vsyncpa [#allocation3], 0
    %9 = vsyncpa [#allocation6], 0
    %10 = vsyncpa [#allocation4], 0
    // Predicated region
    $region2: #{tpu_custom_call.1} parent=1 // pred_check
      _
    $region3: #{tpu_custom_call.1} parent=1 // pred_check_branch
      %12 = sbr.rel (0) target = $region5
    $region4: #{tpu_custom_call.1} parent=1 // pred_region
      %14 = vsyncadd [#allocation3], 0
      %s15 = sshll.u32 %s0, 4
      %s16 = int_to_ptr.hbm [resolvable:$true] %s15
      %s17 = sshll.u32 [#allocation2], 4
      %s18 = int_to_ptr.vmem [resolvable:$true] %s17
      %23 = dma.hbm_to_vmem [thread:$0]  %s16, 256, %s18, [#allocation3], 128, 128, 8
    $region5: #{tpu_custom_call.1} parent=1 // pred_fallthru
      _
    // Predicated region
    $region6: #{tpu_custom_call.1} parent=1 // pred_check
      _
    $region7: #{tpu_custom_call.1} parent=1 // pred_check_branch
      %25 = sbr.rel (0) target = $region9
    $region8: #{tpu_custom_call.1} parent=1 // pred_region
      %27 = vsyncadd [#allocation6], 0
      %s28 = sshll.u32 %s1, 4
      %s29 = int_to_ptr.hbm [resolvable:$true] %s28
      %s30 = sshll.u32 [#allocation5], 4
      %s31 = int_to_ptr.vmem [resolvable:$true] %s30
      %36 = dma.hbm_to_vmem [thread:$0]  %s29, 64, %s31, [#allocation6], 32, 32, 2
    $region9: #{tpu_custom_call.1} parent=1 // pred_fallthru
      _
    // Predicated region
    $region10: #{tpu_custom_call.1} parent=1 // pred_check
      _
    $region11: #{tpu_custom_call.1} parent=1 // pred_check_branch
      %38 = sbr.rel (0) target = $region13
    $region12: #{tpu_custom_call.1} parent=1 // pred_region
      _
    $region13: #{tpu_custom_call.1} parent=1 // pred_fallthru
      _
    // Predicated region
    $region14: #{tpu_custom_call.1} parent=1 // pred_check
      _
    $region15: #{tpu_custom_call.1} parent=1 // pred_check_branch
      %40 = sbr.rel (0) target = $region17
    $region16: #{tpu_custom_call.1} parent=1 // pred_region
      %42 = dma.done [#allocation3], 256
    $region17: #{tpu_custom_call.1} parent=1 // pred_fallthru
      _
    // Predicated region
    $region18: #{tpu_custom_call.1} parent=1 // pred_check
      _
    $region19: #{tpu_custom_call.1} parent=1 // pred_check_branch
      %44 = sbr.rel (0) target = $region21
    $region20: #{tpu_custom_call.1} parent=1 // pred_region
      %46 = dma.done [#allocation6], 64
    $region21: #{tpu_custom_call.1} parent=1 // pred_fallthru
      _
    %v49 = vld [vmem:[#allocation5] sm:$0x3]
    %v50 = vld [vmem:[#allocation5 + $0x2] sm:$0x3]
    %vm51 = vnez %v49
    %vm52 = vnez %v50
    %v53 = vld [vmem:[%s2] sm:$0x1]
    %v54 = vld [vmem:[#allocation2] sm:$0xff]
    %v55 = vld [vmem:[#allocation2 + $0x8] sm:$0xff]
    %v57 = vperm.slane %v53, 0
    %v59 = vsel %vm51, 16843009, 0
    %v60 = vsel %vm52, 16843009, 0
    %v61 = vunpack.c.0.s8 %v59
    %v62 = vunpack.c.0.s8 %v60
    %vm63 = vcmp.ne.s32.totalorder %v61, 0
    %vm64 = vcmp.ne.s32.totalorder %v62, 0
    %v65 = vsel %vm63, %v57, %v54
    %v66 = vsel %vm64, %v57, %v55
    %vm67 = vcmask 302080
    %68 = vst.msk [vmem:[#allocation7] sm:$0xff] %vm67, %v65
    %69 = vst.msk [vmem:[#allocation7 + $0x8] sm:$0xff] %vm67, %v66
    // Predicated region
    $region22: #{tpu_custom_call.1} parent=1 // pred_check
      _
    $region23: #{tpu_custom_call.1} parent=1 // pred_check_branch
      %71 = sbr.rel (0) target = $region25
    $region24: #{tpu_custom_call.1} parent=1 // pred_region
      %73 = vsyncadd [#allocation4], 0
      %s74 = sshll.u32 [#allocation7], 4
      %s75 = int_to_ptr.vmem [resolvable:$true] %s74
      %s76 = sshll.u32 %s3, 4
      %s77 = int_to_ptr.hbm [resolvable:$true] %s76
      %82 = dma.vmem_to_hbm [thread:$0]  %s75, 256, %s77, [#allocation4], 128, 128, 8
    $region25: #{tpu_custom_call.1} parent=1 // pred_fallthru
      _
    // Predicated region
    $region26: #{tpu_custom_call.1} parent=1 // pred_check
      _
    $region27: #{tpu_custom_call.1} parent=1 // pred_check_branch
      %84 = sbr.rel (0) target = $region29
    $region28: #{tpu_custom_call.1} parent=1 // pred_region
      %86 = dma.done [#allocation4], 256
    $region29: #{tpu_custom_call.1} parent=1 // pred_fallthru
      _
    %87 = vsyncpa [#allocation3], 1
    %88 = vsyncpa [#allocation6], 1
    %89 = vsyncpa [#allocation4], 1

</llo_original>
